<compile_context>
chip_gen: v6e
topology: v6e:2x2x1
jax: 0.10.0
libtpu: 0.0.40
codegen_flags: <defaults>
</compile_context>

<pallas_src>
import functools

import jax
import jax.numpy as jnp
from jax.experimental import pallas as pl
from jax.experimental.pallas import tpu as pltpu

BN_EPS = 1e-5
LANE = 128
SUBLANE = 8
TM_MAX = 512    # rows per batch tile (mem-bound: bigger tiles -> closer to HBM roofline)
TK_MAX = 2048   # d_in columns per K tile


def _round_up(x, m):
    return (x + m - 1) // m * m


def _pad_d_in(d_in, tk_max=TK_MAX):
    """Padded feature dim and K-tile size (tk divides d_pad, tk % 128 == 0)."""
    d128 = _round_up(d_in, LANE)
    if d128 <= tk_max:
        return d128, d128
    return _round_up(d128, tk_max), tk_max


def _choose_tm(b_pad, tm_max=TM_MAX):
    """Largest multiple of SUBLANE dividing b_pad, <= tm_max, preferring >=2
    batch tiles when the batch is big enough (keeps both v7x TCs busy)."""
    cap = tm_max
    if b_pad >= 2 * SUBLANE:
        cap = min(cap, b_pad // 2)
    best = SUBLANE
    t = SUBLANE
    while t <= min(cap, b_pad):
        if b_pad % t == 0:
            best = t
        t += SUBLANE
    return best


# ----------------------------- kernel ------------------------------------- #
def _basedeep_kernel(x_ref, w1_ref, b1_ref, w2_ref, b2_ref, w3_ref, b3_ref,
                     o_ref, acc_ref):
    k = pl.program_id(1)

    @pl.when(k == 0)
    def _():
        acc_ref[...] = jnp.zeros_like(acc_ref)

    # Layer 1 partial product: cast the f32 x tile to bf16 in VMEM (free VPU
    # work hidden under the MXU/DMA), accumulate in f32.
    acc_ref[...] += jnp.dot(
        x_ref[...].astype(jnp.bfloat16), w1_ref[...],
        preferred_element_type=jnp.float32)

    @pl.when(k == pl.num_programs(1) - 1)
    def _():
        # Layer 1 epilogue: folded eval-mode BN bias + ReLU (Dropout == identity).
        h = jnp.maximum(acc_ref[...] + b1_ref[...], 0.0)
        # Layer 2: Linear (+ folded BN) + ReLU, bf16 MXU inputs, f32 accumulate.
        h = jnp.dot(h.astype(jnp.bfloat16), w2_ref[...],
                    preferred_element_type=jnp.float32)
        h = jnp.maximum(h + b2_ref[...], 0.0)
        # Classifier head (lane-padded to 128 outputs -> unmasked store).
        o = jnp.dot(h.astype(jnp.bfloat16), w3_ref[...],
                    preferred_element_type=jnp.float32)
        o_ref[...] = (o + b3_ref[...]).astype(o_ref.dtype)


# --------------------------- param packing --------------------------------- #
def _fold_bn(w, b, gamma, beta, mean, var, eps=BN_EPS):
    """Fold eval-mode BatchNorm1d into the preceding Linear.
    w: (out, in) PyTorch layout; returns W' as (in, out) and b' as (out,)."""
    scale = gamma * jax.lax.rsqrt(var + eps)
    w_f = (w * scale[:, None]).T
    b_f = (b - mean) * scale + beta
    return w_f, b_f


def pack_params(params, compute_dtype=jnp.bfloat16):
    """BN-fold, transpose to (in,out), K-pad W1 rows, lane-pad the head,
    cast all weights to bf16 (biases stay f32)."""
    (w1, b1, g1, be1, m1, v1,
     w2, b2, g2, be2, m2, v2,
     w3, b3) = params

    w1f, b1f = _fold_bn(w1, b1, g1, be1, m1, v1)
    w2f, b2f = _fold_bn(w2, b2, g2, be2, m2, v2)
    w3f, b3f = w3.T, b3

    d_in = w1f.shape[0]
    d_pad, _ = _pad_d_in(d_in)
    if d_pad != d_in:
        w1f = jnp.pad(w1f, ((0, d_pad - d_in), (0, 0)))

    nc = w3f.shape[1]
    nc_pad = _round_up(nc, LANE)
    w3f = jnp.pad(w3f, ((0, 0), (0, nc_pad - nc)))
    b3f = jnp.pad(b3f, (0, nc_pad - nc))

    return (
        w1f.astype(compute_dtype),
        b1f.reshape(1, -1).astype(jnp.float32),
        w2f.astype(compute_dtype),
        b2f.reshape(1, -1).astype(jnp.float32),
        w3f.astype(compute_dtype),
        b3f.reshape(1, -1).astype(jnp.float32),
    )


# ------------------------------ wrapper ------------------------------------ #
def basedeep_forward(x_nchw, packed, num_classes):
    """x_nchw: (B, C, H, W) float32 -> logits (B, num_classes) float32."""
    w1, b1, w2, b2, w3, b3 = packed
    d_pad, h1 = w1.shape
    h2 = w2.shape[1]
    nc_pad = w3.shape[1]

    B = x_nchw.shape[0]
    x = x_nchw.reshape(B, -1)                 # nn.Flatten (row-major); keep f32,
    d_in = x.shape[1]                         # bf16 cast happens inside the kernel.

    # Zero-pad feature dim to the K-tiled width (zeros contribute nothing).
    if d_pad != d_in:
        x = jnp.pad(x, ((0, 0), (0, d_pad - d_in)))

    # Batch: pad only to a sublane multiple, pick tm dividing the padded batch.
    b_pad = _round_up(B, SUBLANE)
    if b_pad != B:
        x = jnp.pad(x, ((0, b_pad - B), (0, 0)))
    tm = _choose_tm(b_pad)

    tk = d_pad if d_pad <= TK_MAX else TK_MAX
    nk = d_pad // tk
    grid = (b_pad // tm, nk)

    flops = 2 * b_pad * (d_pad * h1 + h1 * h2 + h2 * nc_pad)
    bytes_accessed = int(
        x.size * 4
        + sum(int(a.size) * a.dtype.itemsize for a in packed)
        + b_pad * nc_pad * 4
    )

    # VMEM: double-buffered x tile (f32) + W1 tile (bf16) + output tile,
    # resident small weights, accumulator scratch.  Generous margin, capped
    # below v7x physical (64 MiB).
    vmem_need = (
        2 * tm * tk * 4
        + 2 * tk * h1 * 2
        + 2 * tm * nc_pad * 4
        + tm * h1 * 4
        + 2 * (h1 * h2 * 2 + h2 * nc_pad * 2 + (h1 + h2 + nc_pad) * 4)
    )
    vmem_limit = int(min(56 * 2**20, max(2 * vmem_need, 32 * 2**20)))

    out = pl.pallas_call(
        _basedeep_kernel,
        out_shape=jax.ShapeDtypeStruct((b_pad, nc_pad), jnp.float32),
        grid=grid,
        in_specs=[
            pl.BlockSpec((tm, tk), lambda i, k: (i, k)),      # x tile (pipelined)
            pl.BlockSpec((tk, h1), lambda i, k: (k, 0)),      # W1 K-slab
            pl.BlockSpec((1, h1), lambda i, k: (0, 0)),       # resident small params
            pl.BlockSpec((h1, h2), lambda i, k: (0, 0)),
            pl.BlockSpec((1, h2), lambda i, k: (0, 0)),
            pl.BlockSpec((h2, nc_pad), lambda i, k: (0, 0)),
            pl.BlockSpec((1, nc_pad), lambda i, k: (0, 0)),
        ],
        out_specs=pl.BlockSpec((tm, nc_pad), lambda i, k: (i, 0)),
        scratch_shapes=[pltpu.VMEM((tm, h1), jnp.float32)],
        compiler_params=pltpu.CompilerParams(
            dimension_semantics=("parallel", "arbitrary"),
            vmem_limit_bytes=vmem_limit),
        cost_estimate=pl.CostEstimate(
            flops=flops, transcendentals=0, bytes_accessed=bytes_accessed),
    )(x, w1, b1, w2, b2, w3, b3)

    return out[:B, :num_classes]


# ------------------------------- init -------------------------------------- #
def init_params(key, channels, width, height, num_classes,
                hidden_size1=64, hidden_size2=32):
    """Matches BaseDeep.__init__: Linear W ~ N(0, 0.001) (PyTorch (out,in)
    layout), biases 0, BN gamma=1, beta=0, running mean=0, running var=1."""
    d_in = channels * width * height
    k1, k2, k3 = jax.random.split(key, 3)

    w1 = 0.001 * jax.random.normal(k1, (hidden_size1, d_in), jnp.float32)
    b1 = jnp.zeros((hidden_size1,), jnp.float32)
    g1, be1 = jnp.ones((hidden_size1,), jnp.float32), jnp.zeros((hidden_size1,), jnp.float32)
    m1, v1 = jnp.zeros((hidden_size1,), jnp.float32), jnp.ones((hidden_size1,), jnp.float32)

    w2 = 0.001 * jax.random.normal(k2, (hidden_size2, hidden_size1), jnp.float32)
    b2 = jnp.zeros((hidden_size2,), jnp.float32)
    g2, be2 = jnp.ones((hidden_size2,), jnp.float32), jnp.zeros((hidden_size2,), jnp.float32)
    m2, v2 = jnp.zeros((hidden_size2,), jnp.float32), jnp.ones((hidden_size2,), jnp.float32)

    w3 = 0.001 * jax.random.normal(k3, (num_classes, hidden_size2), jnp.float32)
    b3 = jnp.zeros((num_classes,), jnp.float32)

    return (w1, b1, g1, be1, m1, v1,
            w2, b2, g2, be2, m2, v2,
            w3, b3)


# ----------------------------- references ---------------------------------- #
def reference_forward(x_nchw, params):
    """Eval-mode module semantics in pure fp32 JAX."""
    (w1, b1, g1, be1, m1, v1,
     w2, b2, g2, be2, m2, v2,
     w3, b3) = params
    x = x_nchw.reshape(x_nchw.shape[0], -1)
    h = x @ w1.T + b1
    h = (h - m1) * jax.lax.rsqrt(v1 + BN_EPS) * g1 + be1
    h = jnp.maximum(h, 0.0)
    h = h @ w2.T + b2
    h = (h - m2) * jax.lax.rsqrt(v2 + BN_EPS) * g2 + be2
    h = jnp.maximum(h, 0.0)
    return h @ w3.T + b3


def reference_forward_packed(x_nchw, packed, num_classes):
    """Mirrors the kernel's numerics (bf16 MXU inputs, fp32 accumulation)."""
    w1, b1, w2, b2, w3, b3 = packed
    dot = functools.partial(jnp.dot, precision=jax.lax.Precision.HIGHEST)
    d_pad = w1.shape[0]
    x = x_nchw.reshape(x_nchw.shape[0], -1)
    x = jnp.pad(x, ((0, 0), (0, d_pad - x.shape[1])))
    x = x.astype(jnp.bfloat16).astype(jnp.float32)
    h = jnp.maximum(dot(x, w1.astype(jnp.float32)) + b1, 0.0)
    h = h.astype(jnp.bfloat16).astype(jnp.float32)
    h = jnp.maximum(dot(h, w2.astype(jnp.float32)) + b2, 0.0)
    h = h.astype(jnp.bfloat16).astype(jnp.float32)
    o = dot(h, w3.astype(jnp.float32)) + b3
    return o[:, :num_classes]


# -------------------------------- main -------------------------------------- #
if __name__ == "__main__":
    B, C, H, W = 2, 4, 16, 16
    NUM_CLASSES = 10

    key = jax.random.PRNGKey(0)
    kx, kp = jax.random.split(key)
    x = jax.random.normal(kx, (B, C, H, W), jnp.float32)
    params = init_params(kp, C, W, H, NUM_CLASSES)
    packed = pack_params(params)

    out = basedeep_forward(x, packed, NUM_CLASSES)
    out = jax.block_until_ready(out)
    assert out.shape == (B, NUM_CLASSES)

    # Tight check against a reference with the kernel's numerics (bf16 inputs).
    ref_exact = reference_forward_packed(x, packed, NUM_CLASSES)
    assert jnp.allclose(out, ref_exact, atol=1e-5, rtol=1e-5), "mismatch vs packed reference"

    # Loose check against the pure-fp32 module-semantics reference.
    ref_f32 = reference_forward(x, params)
    assert jnp.allclose(out, ref_f32, atol=1e-4, rtol=5e-2), "mismatch vs fp32 reference"

    print("KERNEL_OK")
</pallas_src>

<mosaic_0001>
module attributes {stable_mosaic.version = 11 : i64} {
  func.func @_basedeep_kernel(%arg0: i32, %arg1: i32, %arg2: memref<8x1024xf32, #tpu.memory_space<vmem>>, %arg3: memref<1024x64xbf16, #tpu.memory_space<vmem>>, %arg4: memref<1x64xf32, #tpu.memory_space<vmem>>, %arg5: memref<64x32xbf16, #tpu.memory_space<vmem>>, %arg6: memref<1x32xf32, #tpu.memory_space<vmem>>, %arg7: memref<32x128xbf16, #tpu.memory_space<vmem>>, %arg8: memref<1x128xf32, #tpu.memory_space<vmem>>, %arg9: memref<8x128xf32, #tpu.memory_space<vmem>>, %arg10: memref<8x64xf32, #tpu.memory_space<vmem>>) attributes {dimension_semantics = [#tpu.dimension_semantics<parallel>, #tpu.dimension_semantics<arbitrary>], iteration_bounds = array<i64: 1, 1>, scalar_prefetch = 0 : i64, scratch_operands = 1 : i64, tpu.core_type = #tpu.core_type<tc>, window_params = [{transform_indices = @transform_0, window_bounds = array<i64: 8, 1024>}, {transform_indices = @transform_1, window_bounds = array<i64: 1024, 64>}, {pipeline_mode = #tpu.pipeline_mode<synchronous>, transform_indices = @transform_2, window_bounds = array<i64: 1, 64>}, {pipeline_mode = #tpu.pipeline_mode<synchronous>, transform_indices = @transform_3, window_bounds = array<i64: 64, 32>}, {pipeline_mode = #tpu.pipeline_mode<synchronous>, transform_indices = @transform_4, window_bounds = array<i64: 1, 32>}, {pipeline_mode = #tpu.pipeline_mode<synchronous>, transform_indices = @transform_5, window_bounds = array<i64: 32, 128>}, {pipeline_mode = #tpu.pipeline_mode<synchronous>, transform_indices = @transform_6, window_bounds = array<i64: 1, 128>}, {transform_indices = @transform_7, window_bounds = array<i64: 8, 128>}]} {
    %c0_i32 = arith.constant 0 : i32
    %0 = arith.cmpi eq, %arg1, %c0_i32 : i32
    %1 = arith.extui %0 : i1 to i32
    %c0_i32_0 = arith.constant 0 : i32
    %2 = arith.cmpi ne, %1, %c0_i32_0 : i32
    scf.if %2 {
      %cst_10 = arith.constant 0.000000e+00 : f32
      %13 = vector.broadcast %cst_10 : f32 to vector<8x64xf32>
      %c0_11 = arith.constant 0 : index
      %c0_12 = arith.constant 0 : index
      %14 = vector.load %arg10[%c0_11, %c0_12] : memref<8x64xf32, #tpu.memory_space<vmem>>, vector<8x64xf32>
      tpu.vector_store %arg10[%c0_11, %c0_12], %13 {strides = array<i32>} : memref<8x64xf32, #tpu.memory_space<vmem>>, vector<8x64xf32>,
    } else {
    }
    %c0 = arith.constant 0 : index
    %c0_1 = arith.constant 0 : index
    %3 = vector.load %arg10[%c0, %c0_1] : memref<8x64xf32, #tpu.memory_space<vmem>>, vector<8x64xf32>
    %c0_2 = arith.constant 0 : index
    %c0_3 = arith.constant 0 : index
    %4 = vector.load %arg2[%c0_2, %c0_3] : memref<8x1024xf32, #tpu.memory_space<vmem>>, vector<8x1024xf32>
    %5 = arith.truncf %4 : vector<8x1024xf32> to vector<8x1024xbf16>
    %c0_4 = arith.constant 0 : index
    %c0_5 = arith.constant 0 : index
    %6 = vector.load %arg3[%c0_4, %c0_5] : memref<1024x64xbf16, #tpu.memory_space<vmem>>, vector<1024x64xbf16>
    %cst = arith.constant dense<0.000000e+00> : vector<8x64xf32>
    %7 = tpu.matmul %5, %6, %cst {dimension_numbers = #tpu.dot_dimension_numbers<[1], [0], [0], [1], [0, 0, 1, 1], [], []>} : vector<8x1024xbf16>, vector<1024x64xbf16>, vector<8x64xf32> -> vector<8x64xf32>
    %8 = arith.addf %3, %7 : vector<8x64xf32>
    %c0_6 = arith.constant 0 : index
    %c0_7 = arith.constant 0 : index
    %9 = vector.load %arg10[%c0_6, %c0_7] : memref<8x64xf32, #tpu.memory_space<vmem>>, vector<8x64xf32>
    tpu.vector_store %arg10[%c0_6, %c0_7], %8 {strides = array<i32>} : memref<8x64xf32, #tpu.memory_space<vmem>>, vector<8x64xf32>,
    %c0_i32_8 = arith.constant 0 : i32
    %10 = arith.cmpi eq, %arg1, %c0_i32_8 : i32
    %11 = arith.extui %10 : i1 to i32
    %c0_i32_9 = arith.constant 0 : i32
    %12 = arith.cmpi ne, %11, %c0_i32_9 : i32
    scf.if %12 {
      %c0_10 = arith.constant 0 : index
      %c0_11 = arith.constant 0 : index
      %13 = vector.load %arg10[%c0_10, %c0_11] : memref<8x64xf32, #tpu.memory_space<vmem>>, vector<8x64xf32>
      %c0_12 = arith.constant 0 : index
      %c0_13 = arith.constant 0 : index
      %14 = vector.load %arg4[%c0_12, %c0_13] : memref<1x64xf32, #tpu.memory_space<vmem>>, vector<1x64xf32>
      %15 = vector.broadcast %14 : vector<1x64xf32> to vector<8x64xf32>
      %16 = arith.addf %13, %15 : vector<8x64xf32>
      %cst_14 = arith.constant 0.000000e+00 : f32
      %17 = vector.broadcast %cst_14 : f32 to vector<8x64xf32>
      %18 = arith.maximumf %16, %17 : vector<8x64xf32>
      %19 = arith.truncf %18 : vector<8x64xf32> to vector<8x64xbf16>
      %c0_15 = arith.constant 0 : index
      %c0_16 = arith.constant 0 : index
      %20 = vector.load %arg5[%c0_15, %c0_16] : memref<64x32xbf16, #tpu.memory_space<vmem>>, vector<64x32xbf16>
      %cst_17 = arith.constant dense<0.000000e+00> : vector<8x32xf32>
      %21 = tpu.matmul %19, %20, %cst_17 {dimension_numbers = #tpu.dot_dimension_numbers<[1], [0], [0], [1], [0, 0, 1, 1], [], []>} : vector<8x64xbf16>, vector<64x32xbf16>, vector<8x32xf32> -> vector<8x32xf32>
      %c0_18 = arith.constant 0 : index
      %c0_19 = arith.constant 0 : index
      %22 = vector.load %arg6[%c0_18, %c0_19] : memref<1x32xf32, #tpu.memory_space<vmem>>, vector<1x32xf32>
      %23 = vector.broadcast %22 : vector<1x32xf32> to vector<8x32xf32>
      %24 = arith.addf %21, %23 : vector<8x32xf32>
      %cst_20 = arith.constant 0.000000e+00 : f32
      %25 = vector.broadcast %cst_20 : f32 to vector<8x32xf32>
      %26 = arith.maximumf %24, %25 : vector<8x32xf32>
      %27 = arith.truncf %26 : vector<8x32xf32> to vector<8x32xbf16>
      %c0_21 = arith.constant 0 : index
      %c0_22 = arith.constant 0 : index
      %28 = vector.load %arg7[%c0_21, %c0_22] : memref<32x128xbf16, #tpu.memory_space<vmem>>, vector<32x128xbf16>
      %cst_23 = arith.constant dense<0.000000e+00> : vector<8x128xf32>
      %29 = tpu.matmul %27, %28, %cst_23 {dimension_numbers = #tpu.dot_dimension_numbers<[1], [0], [0], [1], [0, 0, 1, 1], [], []>} : vector<8x32xbf16>, vector<32x128xbf16>, vector<8x128xf32> -> vector<8x128xf32>
      %c0_24 = arith.constant 0 : index
      %c0_25 = arith.constant 0 : index
      %30 = vector.load %arg8[%c0_24, %c0_25] : memref<1x128xf32, #tpu.memory_space<vmem>>, vector<1x128xf32>
      %31 = vector.broadcast %30 : vector<1x128xf32> to vector<8x128xf32>
      %32 = arith.addf %29, %31 : vector<8x128xf32>
      %c0_26 = arith.constant 0 : index
      %c0_27 = arith.constant 0 : index
      %33 = vector.load %arg9[%c0_26, %c0_27] : memref<8x128xf32, #tpu.memory_space<vmem>>, vector<8x128xf32>
      tpu.vector_store %arg9[%c0_26, %c0_27], %32 {strides = array<i32>} : memref<8x128xf32, #tpu.memory_space<vmem>>, vector<8x128xf32>,
    } else {
    }
    return
  }
  func.func @transform_0(%arg0: i32, %arg1: i32) -> (i32, i32) {
    %c0_i32 = arith.constant 0 : i32
    return %arg0, %arg1 : i32, i32
  }
  func.func @transform_1(%arg0: i32, %arg1: i32) -> (i32, i32) {
    %c0_i32 = arith.constant 0 : i32
    %c0_i32_0 = arith.constant 0 : i32
    return %arg1, %c0_i32 : i32, i32
  }
  func.func @transform_2(%arg0: i32, %arg1: i32) -> (i32, i32) {
    %c0_i32 = arith.constant 0 : i32
    %c0_i32_0 = arith.constant 0 : i32
    %c0_i32_1 = arith.constant 0 : i32
    return %c0_i32, %c0_i32_0 : i32, i32
  }
  func.func @transform_3(%arg0: i32, %arg1: i32) -> (i32, i32) {
    %c0_i32 = arith.constant 0 : i32
    %c0_i32_0 = arith.constant 0 : i32
    %c0_i32_1 = arith.constant 0 : i32
    return %c0_i32, %c0_i32_0 : i32, i32
  }
  func.func @transform_4(%arg0: i32, %arg1: i32) -> (i32, i32) {
    %c0_i32 = arith.constant 0 : i32
    %c0_i32_0 = arith.constant 0 : i32
    %c0_i32_1 = arith.constant 0 : i32
    return %c0_i32, %c0_i32_0 : i32, i32
  }
  func.func @transform_5(%arg0: i32, %arg1: i32) -> (i32, i32) {
    %c0_i32 = arith.constant 0 : i32
    %c0_i32_0 = arith.constant 0 : i32
    %c0_i32_1 = arith.constant 0 : i32
    return %c0_i32, %c0_i32_0 : i32, i32
  }
  func.func @transform_6(%arg0: i32, %arg1: i32) -> (i32, i32) {
    %c0_i32 = arith.constant 0 : i32
    %c0_i32_0 = arith.constant 0 : i32
    %c0_i32_1 = arith.constant 0 : i32
    return %c0_i32, %c0_i32_0 : i32, i32
  }
  func.func @transform_7(%arg0: i32, %arg1: i32) -> (i32, i32) {
    %c0_i32 = arith.constant 0 : i32
    %c0_i32_0 = arith.constant 0 : i32
    return %arg0, %c0_i32 : i32, i32
  }
}

</mosaic_0001>

<llo_original>
// kernel: tpu_custom_call.1
$region0: #{tpu_custom_call.1}
  #allocation0 [shape = 'u32[]', space=smem, size = 0x4, offset = 0x4, fixed_abs, tag = 'smem constant byte address 0x4 - core index']
  #allocation1 [shape = 'u32[144,128]{1,0:T(1,128)}', space=vmem, size = 0x12000, scoped, tag = 'internal scratch']
  #allocation2 [shape = 'f32[8,64]{1,0:T(8,128)}', space=vmem, size = 0x1000, scoped, tag = 'scratch operand']
  %s0 = inlined_call_operand.vmem [shape: f32[8,1024], index: 0, kind: input, shape index: {}]
  %s1 = inlined_call_operand.vmem [shape: bf16[1024,64], index: 1, kind: input, shape index: {}]
  %s2 = inlined_call_operand.vmem [shape: f32[1,64], index: 2, kind: input, shape index: {}]
  %s3 = inlined_call_operand.vmem [shape: bf16[64,32], index: 3, kind: input, shape index: {}]
  %s4 = inlined_call_operand.vmem [shape: f32[1,32], index: 4, kind: input, shape index: {}]
  %s5 = inlined_call_operand.vmem [shape: bf16[32,128], index: 5, kind: input, shape index: {}]
  %s6 = inlined_call_operand.vmem [shape: f32[1,128], index: 6, kind: input, shape index: {}]
  %s7 = inlined_call_operand.hbm [shape: f32[8,128], index: 7, kind: output, shape index: {}]
  %s8 = sld [smem:[#allocation0]]
  $region46: #{tpu_custom_call.1} parent=0
    _
  %s10 = ssub.s32 1, %s8
  %s11 = scalar_select 0, %s10, %s8
  $region1: #{tpu_custom_call.1} parent=0
    #allocation3 [shape = 'u8[4096]{0}', space=vmem, size = 0x1000, scoped, tag = 'output window, operand 0, single buffered']
    #allocation4 [shape = 's32[1]{0}', space=sflag, size = 0x4, scoped, tag = 'scoped memory for tpu_custom_call.1']
    %12 = vsyncpa [#allocation4], 0
    // Predicated region
    $region2: #{tpu_custom_call.1} parent=1 // pred_check
      _
    $region3: #{tpu_custom_call.1} parent=1 // pred_check_branch
      %14 = sbr.rel (0) target = $region5
    $region4: #{tpu_custom_call.1} parent=1 // pred_region
      _
    $region5: #{tpu_custom_call.1} parent=1 // pred_fallthru
      _
    // Predicated region
    $region6: #{tpu_custom_call.1} parent=1 // pred_check
      _
    $region7: #{tpu_custom_call.1} parent=1 // pred_check_branch
      %16 = sbr.rel (0) target = $region9
    $region8: #{tpu_custom_call.1} parent=1 // pred_region
      _
    $region9: #{tpu_custom_call.1} parent=1 // pred_fallthru
      _
    // Predicated region
    $region10: #{tpu_custom_call.1} parent=1 // pred_check
      _
    $region11: #{tpu_custom_call.1} parent=1 // pred_check_branch
      %18 = sbr.rel (0) target = $region13
    $region12: #{tpu_custom_call.1} parent=1 // pred_region
      _
    $region13: #{tpu_custom_call.1} parent=1 // pred_fallthru
      _
    // Predicated region
    $region14: #{tpu_custom_call.1} parent=1 // pred_check
      _
    $region15: #{tpu_custom_call.1} parent=1 // pred_check_branch
      %20 = sbr.rel (0) target = $region17
    $region16: #{tpu_custom_call.1} parent=1 // pred_region
      _
    $region17: #{tpu_custom_call.1} parent=1 // pred_fallthru
      _
    // Predicated region
    $region18: #{tpu_custom_call.1} parent=1 // pred_check
      _
    $region19: #{tpu_custom_call.1} parent=1 // pred_check_branch
      %22 = sbr.rel (0) target = $region21
    $region20: #{tpu_custom_call.1} parent=1 // pred_region
      _
    $region21: #{tpu_custom_call.1} parent=1 // pred_fallthru
      _
    // Predicated region
    $region22: #{tpu_custom_call.1} parent=1 // pred_check
      _
    $region23: #{tpu_custom_call.1} parent=1 // pred_check_branch
      %24 = sbr.rel (0) target = $region25
    $region24: #{tpu_custom_call.1} parent=1 // pred_region
      _
    $region25: #{tpu_custom_call.1} parent=1 // pred_fallthru
      _
    // Predicated region
    $region26: #{tpu_custom_call.1} parent=1 // pred_check
      _
    $region27: #{tpu_custom_call.1} parent=1 // pred_check_branch
      %26 = sbr.rel (0) target = $region29
    $region28: #{tpu_custom_call.1} parent=1 // pred_region
      _
    $region29: #{tpu_custom_call.1} parent=1 // pred_fallthru
      _
    %p28 = scmp.eq.s32.totalorder 0, 0
    // Predicated region
    $region30: #{tpu_custom_call.1} parent=1 // pred_check
      %p29 = pneg %p28
    $region31: #{tpu_custom_call.1} parent=1 // pred_check_branch
      %31 = sbr.rel (%p29) target = $region33
    $region32: #{tpu_custom_call.1} parent=1 // pred_region
      %vm32 = vcmask 523264
      %33 = vst.msk [vmem:[#allocation2] sm:$0xff] %vm32, 0.0
    $region33: #{tpu_custom_call.1} parent=1 // pred_fallthru
      _
    %v34 = vld [vmem:[#allocation2] sm:$0xff]
    %v35 = vld [vmem:[%s0] sm:$0xff]
    %v36 = vld [vmem:[%s0 + $0x8] sm:$0xff]
    %v37 = vld [vmem:[%s0 + $0x10] sm:$0xff]
    %v38 = vld [vmem:[%s0 + $0x18] sm:$0xff]
    %v39 = vld [vmem:[%s0 + $0x20] sm:$0xff]
    %v40 = vld [vmem:[%s0 + $0x28] sm:$0xff]
    %v41 = vld [vmem:[%s0 + $0x30] sm:$0xff]
    %v42 = vld [vmem:[%s0 + $0x38] sm:$0xff]
    %v43 = vpack.c.bf16 %v35, %v35
    %v44 = vpack.c.bf16 %v36, %v36
    %v45 = vpack.c.bf16 %v37, %v37
    %v46 = vpack.c.bf16 %v38, %v38
    %v47 = vpack.c.bf16 %v39, %v39
    %v48 = vpack.c.bf16 %v40, %v40
    %v49 = vpack.c.bf16 %v41, %v41
    %v50 = vpack.c.bf16 %v42, %v42
    %v51 = vld [vmem:[%s1] sm:$0xf]
    %v52 = vld [vmem:[%s1 + $0x4] sm:$0xf]
    %v53 = vld [vmem:[%s1 + $0x8] sm:$0xf]
    %v54 = vld [vmem:[%s1 + $0xc] sm:$0xf]
    %v55 = vld [vmem:[%s1 + $0x10] sm:$0xf]
    %v56 = vld [vmem:[%s1 + $0x14] sm:$0xf]
    %v57 = vld [vmem:[%s1 + $0x18] sm:$0xf]
    %v58 = vld [vmem:[%s1 + $0x1c] sm:$0xf]
    %v59 = vld [vmem:[%s1 + $0x20] sm:$0xf]
    %v60 = vld [vmem:[%s1 + $0x24] sm:$0xf]
    %v61 = vld [vmem:[%s1 + $0x28] sm:$0xf]
    %v62 = vld [vmem:[%s1 + $0x2c] sm:$0xf]
    %v63 = vld [vmem:[%s1 + $0x30] sm:$0xf]
    %v64 = vld [vmem:[%s1 + $0x34] sm:$0xf]
    %v65 = vld [vmem:[%s1 + $0x38] sm:$0xf]
    %v66 = vld [vmem:[%s1 + $0x3c] sm:$0xf]
    %v67 = vld [vmem:[%s1 + $0x40] sm:$0xf]
    %v68 = vld [vmem:[%s1 + $0x44] sm:$0xf]
    %v69 = vld [vmem:[%s1 + $0x48] sm:$0xf]
    %v70 = vld [vmem:[%s1 + $0x4c] sm:$0xf]
    %v71 = vld [vmem:[%s1 + $0x50] sm:$0xf]
    %v72 = vld [vmem:[%s1 + $0x54] sm:$0xf]
    %v73 = vld [vmem:[%s1 + $0x58] sm:$0xf]
    %v74 = vld [vmem:[%s1 + $0x5c] sm:$0xf]
    %v75 = vld [vmem:[%s1 + $0x60] sm:$0xf]
    %v76 = vld [vmem:[%s1 + $0x64] sm:$0xf]
    %v77 = vld [vmem:[%s1 + $0x68] sm:$0xf]
    %v78 = vld [vmem:[%s1 + $0x6c] sm:$0xf]
    %v79 = vld [vmem:[%s1 + $0x70] sm:$0xf]
    %v80 = vld [vmem:[%s1 + $0x74] sm:$0xf]
    %v81 = vld [vmem:[%s1 + $0x78] sm:$0xf]
    %v82 = vld [vmem:[%s1 + $0x7c] sm:$0xf]
    %v83 = vld [vmem:[%s1 + $0x80] sm:$0xf]
    %v84 = vld [vmem:[%s1 + $0x84] sm:$0xf]
    %v85 = vld [vmem:[%s1 + $0x88] sm:$0xf]
    %v86 = vld [vmem:[%s1 + $0x8c] sm:$0xf]
    %v87 = vld [vmem:[%s1 + $0x90] sm:$0xf]
    %v88 = vld [vmem:[%s1 + $0x94] sm:$0xf]
    %v89 = vld [vmem:[%s1 + $0x98] sm:$0xf]
    %v90 = vld [vmem:[%s1 + $0x9c] sm:$0xf]
    %v91 = vld [vmem:[%s1 + $0xa0] sm:$0xf]
    %v92 = vld [vmem:[%s1 + $0xa4] sm:$0xf]
    %v93 = vld [vmem:[%s1 + $0xa8] sm:$0xf]
    %v94 = vld [vmem:[%s1 + $0xac] sm:$0xf]
    %v95 = vld [vmem:[%s1 + $0xb0] sm:$0xf]
    %v96 = vld [vmem:[%s1 + $0xb4] sm:$0xf]
    %v97 = vld [vmem:[%s1 + $0xb8] sm:$0xf]
    %v98 = vld [vmem:[%s1 + $0xbc] sm:$0xf]
    %v99 = vld [vmem:[%s1 + $0xc0] sm:$0xf]
    %v100 = vld [vmem:[%s1 + $0xc4] sm:$0xf]
    %v101 = vld [vmem:[%s1 + $0xc8] sm:$0xf]
    %v102 = vld [vmem:[%s1 + $0xcc] sm:$0xf]
    %v103 = vld [vmem:[%s1 + $0xd0] sm:$0xf]
    %v104 = vld [vmem:[%s1 + $0xd4] sm:$0xf]
    %v105 = vld [vmem:[%s1 + $0xd8] sm:$0xf]
    %v106 = vld [vmem:[%s1 + $0xdc] sm:$0xf]
    %v107 = vld [vmem:[%s1 + $0xe0] sm:$0xf]
    %v108 = vld [vmem:[%s1 + $0xe4] sm:$0xf]
    %v109 = vld [vmem:[%s1 + $0xe8] sm:$0xf]
    %v110 = vld [vmem:[%s1 + $0xec] sm:$0xf]
    %v111 = vld [vmem:[%s1 + $0xf0] sm:$0xf]
    %v112 = vld [vmem:[%s1 + $0xf4] sm:$0xf]
    %v113 = vld [vmem:[%s1 + $0xf8] sm:$0xf]
    %v114 = vld [vmem:[%s1 + $0xfc] sm:$0xf]
    %v115 = vld [vmem:[%s1 + $0x100] sm:$0xf]
    %v116 = vld [vmem:[%s1 + $0x104] sm:$0xf]
    %v117 = vld [vmem:[%s1 + $0x108] sm:$0xf]
    %v118 = vld [vmem:[%s1 + $0x10c] sm:$0xf]
    %v119 = vld [vmem:[%s1 + $0x110] sm:$0xf]
    %v120 = vld [vmem:[%s1 + $0x114] sm:$0xf]
    %v121 = vld [vmem:[%s1 + $0x118] sm:$0xf]
    %v122 = vld [vmem:[%s1 + $0x11c] sm:$0xf]
    %v123 = vld [vmem:[%s1 + $0x120] sm:$0xf]
    %v124 = vld [vmem:[%s1 + $0x124] sm:$0xf]
    %v125 = vld [vmem:[%s1 + $0x128] sm:$0xf]
    %v126 = vld [vmem:[%s1 + $0x12c] sm:$0xf]
    %v127 = vld [vmem:[%s1 + $0x130] sm:$0xf]
    %v128 = vld [vmem:[%s1 + $0x134] sm:$0xf]
    %v129 = vld [vmem:[%s1 + $0x138] sm:$0xf]
    %v130 = vld [vmem:[%s1 + $0x13c] sm:$0xf]
    %v131 = vld [vmem:[%s1 + $0x140] sm:$0xf]
    %v132 = vld [vmem:[%s1 + $0x144] sm:$0xf]
    %v133 = vld [vmem:[%s1 + $0x148] sm:$0xf]
    %v134 = vld [vmem:[%s1 + $0x14c] sm:$0xf]
    %v135 = vld [vmem:[%s1 + $0x150] sm:$0xf]
    %v136 = vld [vmem:[%s1 + $0x154] sm:$0xf]
    %v137 = vld [vmem:[%s1 + $0x158] sm:$0xf]
    %v138 = vld [vmem:[%s1 + $0x15c] sm:$0xf]
    %v139 = vld [vmem:[%s1 + $0x160] sm:$0xf]
    %v140 = vld [vmem:[%s1 + $0x164] sm:$0xf]
    %v141 = vld [vmem:[%s1 + $0x168] sm:$0xf]
    %v142 = vld [vmem:[%s1 + $0x16c] sm:$0xf]
    %v143 = vld [vmem:[%s1 + $0x170] sm:$0xf]
    %v144 = vld [vmem:[%s1 + $0x174] sm:$0xf]
    %v145 = vld [vmem:[%s1 + $0x178] sm:$0xf]
    %v146 = vld [vmem:[%s1 + $0x17c] sm:$0xf]
    %v147 = vld [vmem:[%s1 + $0x180] sm:$0xf]
    %v148 = vld [vmem:[%s1 + $0x184] sm:$0xf]
    %v149 = vld [vmem:[%s1 + $0x188] sm:$0xf]
    %v150 = vld [vmem:[%s1 + $0x18c] sm:$0xf]
    %v151 = vld [vmem:[%s1 + $0x190] sm:$0xf]
    %v152 = vld [vmem:[%s1 + $0x194] sm:$0xf]
    %v153 = vld [vmem:[%s1 + $0x198] sm:$0xf]
    %v154 = vld [vmem:[%s1 + $0x19c] sm:$0xf]
    %v155 = vld [vmem:[%s1 + $0x1a0] sm:$0xf]
    %v156 = vld [vmem:[%s1 + $0x1a4] sm:$0xf]
    %v157 = vld [vmem:[%s1 + $0x1a8] sm:$0xf]
    %v158 = vld [vmem:[%s1 + $0x1ac] sm:$0xf]
    %v159 = vld [vmem:[%s1 + $0x1b0] sm:$0xf]
    %v160 = vld [vmem:[%s1 + $0x1b4] sm:$0xf]
    %v161 = vld [vmem:[%s1 + $0x1b8] sm:$0xf]
    %v162 = vld [vmem:[%s1 + $0x1bc] sm:$0xf]
    %v163 = vld [vmem:[%s1 + $0x1c0] sm:$0xf]
    %v164 = vld [vmem:[%s1 + $0x1c4] sm:$0xf]
    %v165 = vld [vmem:[%s1 + $0x1c8] sm:$0xf]
    %v166 = vld [vmem:[%s1 + $0x1cc] sm:$0xf]
    %v167 = vld [vmem:[%s1 + $0x1d0] sm:$0xf]
    %v168 = vld [vmem:[%s1 + $0x1d4] sm:$0xf]
    %v169 = vld [vmem:[%s1 + $0x1d8] sm:$0xf]
    %v170 = vld [vmem:[%s1 + $0x1dc] sm:$0xf]
    %v171 = vld [vmem:[%s1 + $0x1e0] sm:$0xf]
    %v172 = vld [vmem:[%s1 + $0x1e4] sm:$0xf]
    %v173 = vld [vmem:[%s1 + $0x1e8] sm:$0xf]
    %v174 = vld [vmem:[%s1 + $0x1ec] sm:$0xf]
    %v175 = vld [vmem:[%s1 + $0x1f0] sm:$0xf]
    %v176 = vld [vmem:[%s1 + $0x1f4] sm:$0xf]
    %v177 = vld [vmem:[%s1 + $0x1f8] sm:$0xf]
    %v178 = vld [vmem:[%s1 + $0x1fc] sm:$0xf]
    %v307 = vunpack.c.l.b16 %v51
    %v308 = vunpack.c.l.b16 %v52
    %v309 = vunpack.c.l.b16 %v53
    %v310 = vunpack.c.l.b16 %v54
    %v311 = vunpack.c.l.b16 %v55
    %v312 = vunpack.c.l.b16 %v56
    %v313 = vunpack.c.l.b16 %v57
    %v314 = vunpack.c.l.b16 %v58
    %v315 = vunpack.c.l.b16 %v59
    %v316 = vunpack.c.l.b16 %v60
    %v317 = vunpack.c.l.b16 %v61
    %v318 = vunpack.c.l.b16 %v62
    %v319 = vunpack.c.l.b16 %v63
    %v320 = vunpack.c.l.b16 %v64
    %v321 = vunpack.c.l.b16 %v65
    %v322 = vunpack.c.l.b16 %v66
    %v323 = vunpack.c.l.b16 %v67
    %v324 = vunpack.c.l.b16 %v68
    %v325 = vunpack.c.l.b16 %v69
    %v326 = vunpack.c.l.b16 %v70
    %v327 = vunpack.c.l.b16 %v71
    %v328 = vunpack.c.l.b16 %v72
    %v329 = vunpack.c.l.b16 %v73
    %v330 = vunpack.c.l.b16 %v74
    %v331 = vunpack.c.l.b16 %v75
    %v332 = vunpack.c.l.b16 %v76
    %v333 = vunpack.c.l.b16 %v77
    %v334 = vunpack.c.l.b16 %v78
    %v335 = vunpack.c.l.b16 %v79
    %v336 = vunpack.c.l.b16 %v80
    %v337 = vunpack.c.l.b16 %v81
    %v338 = vunpack.c.l.b16 %v82
    %v339 = vunpack.c.l.b16 %v83
    %v340 = vunpack.c.l.b16 %v84
    %v341 = vunpack.c.l.b16 %v85
    %v342 = vunpack.c.l.b16 %v86
    %v343 = vunpack.c.l.b16 %v87
    %v344 = vunpack.c.l.b16 %v88
    %v345 = vunpack.c.l.b16 %v89
    %v346 = vunpack.c.l.b16 %v90
    %v347 = vunpack.c.l.b16 %v91
    %v348 = vunpack.c.l.b16 %v92
    %v349 = vunpack.c.l.b16 %v93
    %v350 = vunpack.c.l.b16 %v94
    %v351 = vunpack.c.l.b16 %v95
    %v352 = vunpack.c.l.b16 %v96
    %v353 = vunpack.c.l.b16 %v97
    %v354 = vunpack.c.l.b16 %v98
    %v355 = vunpack.c.l.b16 %v99
    %v356 = vunpack.c.l.b16 %v100
    %v357 = vunpack.c.l.b16 %v101
    %v358 = vunpack.c.l.b16 %v102
    %v359 = vunpack.c.l.b16 %v103
    %v360 = vunpack.c.l.b16 %v104
    %v361 = vunpack.c.l.b16 %v105
    %v362 = vunpack.c.l.b16 %v106
    %v363 = vunpack.c.l.b16 %v107
    %v364 = vunpack.c.l.b16 %v108
    %v365 = vunpack.c.l.b16 %v109
    %v366 = vunpack.c.l.b16 %v110
    %v367 = vunpack.c.l.b16 %v111
    %v368 = vunpack.c.l.b16 %v112
    %v369 = vunpack.c.l.b16 %v113
    %v370 = vunpack.c.l.b16 %v114
    %v371 = vunpack.c.l.b16 %v115
    %v372 = vunpack.c.l.b16 %v116
    %v373 = vunpack.c.l.b16 %v117
    %v374 = vunpack.c.l.b16 %v118
    %v375 = vunpack.c.l.b16 %v119
    %v376 = vunpack.c.l.b16 %v120
    %v377 = vunpack.c.l.b16 %v121
    %v378 = vunpack.c.l.b16 %v122
    %v379 = vunpack.c.l.b16 %v123
    %v380 = vunpack.c.l.b16 %v124
    %v381 = vunpack.c.l.b16 %v125
    %v382 = vunpack.c.l.b16 %v126
    %v383 = vunpack.c.l.b16 %v127
    %v384 = vunpack.c.l.b16 %v128
    %v385 = vunpack.c.l.b16 %v129
    %v386 = vunpack.c.l.b16 %v130
    %v387 = vunpack.c.l.b16 %v131
    %v388 = vunpack.c.l.b16 %v132
    %v389 = vunpack.c.l.b16 %v133
    %v390 = vunpack.c.l.b16 %v134
    %v391 = vunpack.c.l.b16 %v135
    %v392 = vunpack.c.l.b16 %v136
    %v393 = vunpack.c.l.b16 %v137
    %v394 = vunpack.c.l.b16 %v138
    %v395 = vunpack.c.l.b16 %v139
    %v396 = vunpack.c.l.b16 %v140
    %v397 = vunpack.c.l.b16 %v141
    %v398 = vunpack.c.l.b16 %v142
    %v399 = vunpack.c.l.b16 %v143
    %v400 = vunpack.c.l.b16 %v144
    %v401 = vunpack.c.l.b16 %v145
    %v402 = vunpack.c.l.b16 %v146
    %v403 = vunpack.c.l.b16 %v147
    %v404 = vunpack.c.l.b16 %v148
    %v405 = vunpack.c.l.b16 %v149
    %v406 = vunpack.c.l.b16 %v150
    %v407 = vunpack.c.l.b16 %v151
    %v408 = vunpack.c.l.b16 %v152
    %v409 = vunpack.c.l.b16 %v153
    %v410 = vunpack.c.l.b16 %v154
    %v411 = vunpack.c.l.b16 %v155
    %v412 = vunpack.c.l.b16 %v156
    %v413 = vunpack.c.l.b16 %v157
    %v414 = vunpack.c.l.b16 %v158
    %v415 = vunpack.c.l.b16 %v159
    %v416 = vunpack.c.l.b16 %v160
    %v417 = vunpack.c.l.b16 %v161
    %v418 = vunpack.c.l.b16 %v162
    %v419 = vunpack.c.l.b16 %v163
    %v420 = vunpack.c.l.b16 %v164
    %v421 = vunpack.c.l.b16 %v165
    %v422 = vunpack.c.l.b16 %v166
    %v423 = vunpack.c.l.b16 %v167
    %v424 = vunpack.c.l.b16 %v168
    %v425 = vunpack.c.l.b16 %v169
    %v426 = vunpack.c.l.b16 %v170
    %v427 = vunpack.c.l.b16 %v171
    %v428 = vunpack.c.l.b16 %v172
    %v429 = vunpack.c.l.b16 %v173
    %v430 = vunpack.c.l.b16 %v174
    %v431 = vunpack.c.l.b16 %v175
    %v432 = vunpack.c.l.b16 %v176
    %v433 = vunpack.c.l.b16 %v177
    %v434 = vunpack.c.l.b16 %v178
    %v435 = vpack.c.b16 %v308, %v307
    %v436 = vpack.c.b16 %v310, %v309
    %v437 = vpack.c.b16 %v312, %v311
    %v438 = vpack.c.b16 %v314, %v313
    %v439 = vpack.c.b16 %v316, %v315
    %v440 = vpack.c.b16 %v318, %v317
    %v441 = vpack.c.b16 %v320, %v319
    %v442 = vpack.c.b16 %v322, %v321
    %v443 = vpack.c.b16 %v324, %v323
    %v444 = vpack.c.b16 %v326, %v325
    %v445 = vpack.c.b16 %v328, %v327
    %v446 = vpack.c.b16 %v330, %v329
    %v447 = vpack.c.b16 %v332, %v331
    %v448 = vpack.c.b16 %v334, %v333
    %v449 = vpack.c.b16 %v336, %v335
    %v450 = vpack.c.b16 %v338, %v337
    %v451 = vpack.c.b16 %v340, %v339
    %v452 = vpack.c.b16 %v342, %v341
    %v453 = vpack.c.b16 %v344, %v343
    %v454 = vpack.c.b16 %v346, %v345
    %v455 = vpack.c.b16 %v348, %v347
    %v456 = vpack.c.b16 %v350, %v349
    %v457 = vpack.c.b16 %v352, %v351
    %v458 = vpack.c.b16 %v354, %v353
    %v459 = vpack.c.b16 %v356, %v355
    %v460 = vpack.c.b16 %v358, %v357
    %v461 = vpack.c.b16 %v360, %v359
    %v462 = vpack.c.b16 %v362, %v361
    %v463 = vpack.c.b16 %v364, %v363
    %v464 = vpack.c.b16 %v366, %v365
    %v465 = vpack.c.b16 %v368, %v367
    %v466 = vpack.c.b16 %v370, %v369
    %v467 = vpack.c.b16 %v372, %v371
    %v468 = vpack.c.b16 %v374, %v373
    %v469 = vpack.c.b16 %v376, %v375
    %v470 = vpack.c.b16 %v378, %v377
    %v471 = vpack.c.b16 %v380, %v379
    %v472 = vpack.c.b16 %v382, %v381
    %v473 = vpack.c.b16 %v384, %v383
    %v474 = vpack.c.b16 %v386, %v385
    %v475 = vpack.c.b16 %v388, %v387
    %v476 = vpack.c.b16 %v390, %v389
    %v477 = vpack.c.b16 %v392, %v391
    %v478 = vpack.c.b16 %v394, %v393
    %v479 = vpack.c.b16 %v396, %v395
    %v480 = vpack.c.b16 %v398, %v397
    %v481 = vpack.c.b16 %v400, %v399
    %v482 = vpack.c.b16 %v402, %v401
    %v483 = vpack.c.b16 %v404, %v403
    %v484 = vpack.c.b16 %v406, %v405
    %v485 = vpack.c.b16 %v408, %v407
    %v486 = vpack.c.b16 %v410, %v409
    %v487 = vpack.c.b16 %v412, %v411
    %v488 = vpack.c.b16 %v414, %v413
    %v489 = vpack.c.b16 %v416, %v415
    %v490 = vpack.c.b16 %v418, %v417
    %v491 = vpack.c.b16 %v420, %v419
    %v492 = vpack.c.b16 %v422, %v421
    %v493 = vpack.c.b16 %v424, %v423
    %v494 = vpack.c.b16 %v426, %v425
    %v495 = vpack.c.b16 %v428, %v427
    %v496 = vpack.c.b16 %v430, %v429
    %v497 = vpack.c.b16 %v432, %v431
    %v498 = vpack.c.b16 %v434, %v433
    %563 = vmatprep.subr.bf16.mxu0 0
    %564 = vmatpush1.bf16.msra.mxu0 %v442
    %565 = vmatprep.subr.bf16.mxu0 0
    %566 = vmatpush1.bf16.msra.mxu0 %v441
    %567 = vmatprep.subr.bf16.mxu0 0
    %568 = vmatpush1.bf16.msra.mxu0 %v440
    %569 = vmatprep.subr.bf16.mxu0 0
    %570 = vmatpush1.bf16.msra.mxu0 %v439
    %571 = vmatprep.subr.bf16.mxu0 0
    %572 = vmatpush1.bf16.msra.mxu0 %v438
    %573 = vmatprep.subr.bf16.mxu0 0
    %574 = vmatpush1.bf16.msra.mxu0 %v437
    %575 = vmatprep.subr.bf16.mxu0 0
    %576 = vmatpush1.bf16.msra.mxu0 %v436
    %577 = vmatprep.subr.bf16.mxu0 0
    %578 = vmatpush1.bf16.msra.mxu0 %v435
    %579 = vmatprep.subr.bf16.mxu0 0
    %580 = vmatpush2.bf16.msra.mxu0 %v450
    %581 = vmatprep.subr.bf16.mxu0 0
    %582 = vmatpush2.bf16.msra.mxu0 %v449
    %583 = vmatprep.subr.bf16.mxu0 0
    %584 = vmatpush2.bf16.msra.mxu0 %v448
    %585 = vmatprep.subr.bf16.mxu0 0
    %586 = vmatpush2.bf16.msra.mxu0 %v447
    %587 = vmatprep.subr.bf16.mxu0 0
    %588 = vmatpush2.bf16.msra.mxu0 %v446
    %589 = vmatprep.subr.bf16.mxu0 0
    %590 = vmatpush2.bf16.msra.mxu0 %v445
    %591 = vmatprep.subr.bf16.mxu0 0
    %592 = vmatpush2.bf16.msra.mxu0 %v444
    %593 = vmatprep.subr.bf16.mxu0 0
    %594 = vmatpush2.bf16.msra.mxu0 %v443
    %595 = vmatprep.mubr.bf16.mxu0 %v44
    %596 = vmatmul.mubr.bf16.gmra.mxu0 %v43
    %v597 = vpop.f32.mrf.mxu0
    %v598 = vadd.f32 0.0, %v597
    %v599 = vpop.f32.mrf.mxu0
    %v600 = vpop.f32.mrf.mxu0
    %v601 = vpop.f32.mrf.mxu0
    %602 = vdwg.mxu0
    %603 = vmatprep.subr.bf16.mxu0 0
    %604 = vmatpush1.bf16.msra.mxu0 %v458
    %605 = vmatprep.subr.bf16.mxu0 0
    %606 = vmatpush1.bf16.msra.mxu0 %v457
    %607 = vmatprep.subr.bf16.mxu0 0
    %608 = vmatpush1.bf16.msra.mxu0 %v456
    %609 = vmatprep.subr.bf16.mxu0 0
    %610 = vmatpush1.bf16.msra.mxu0 %v455
    %611 = vmatprep.subr.bf16.mxu0 0
    %612 = vmatpush1.bf16.msra.mxu0 %v454
    %613 = vmatprep.subr.bf16.mxu0 0
    %614 = vmatpush1.bf16.msra.mxu0 %v453
    %615 = vmatprep.subr.bf16.mxu0 0
    %616 = vmatpush1.bf16.msra.mxu0 %v452
    %617 = vmatprep.subr.bf16.mxu0 0
    %618 = vmatpush1.bf16.msra.mxu0 %v451
    %619 = vmatprep.subr.bf16.mxu0 0
    %620 = vmatpush2.bf16.msra.mxu0 %v466
    %621 = vmatprep.subr.bf16.mxu0 0
    %622 = vmatpush2.bf16.msra.mxu0 %v465
    %623 = vmatprep.subr.bf16.mxu0 0
    %624 = vmatpush2.bf16.msra.mxu0 %v464
    %625 = vmatprep.subr.bf16.mxu0 0
    %626 = vmatpush2.bf16.msra.mxu0 %v463
    %627 = vmatprep.subr.bf16.mxu0 0
    %628 = vmatpush2.bf16.msra.mxu0 %v462
    %629 = vmatprep.subr.bf16.mxu0 0
    %630 = vmatpush2.bf16.msra.mxu0 %v461
    %631 = vmatprep.subr.bf16.mxu0 0
    %632 = vmatpush2.bf16.msra.mxu0 %v460
    %633 = vmatprep.subr.bf16.mxu0 0
    %634 = vmatpush2.bf16.msra.mxu0 %v459
    %635 = vmatprep.mubr.bf16.mxu0 %v46
    %636 = vmatmul.mubr.bf16.gmra.mxu0 %v45
    %v637 = vpop.f32.mrf.mxu0
    %v638 = vadd.f32 %v598, %v637
    %v639 = vpop.f32.mrf.mxu0
    %v640 = vpop.f32.mrf.mxu0
    %v641 = vpop.f32.mrf.mxu0
    %642 = vdwg.mxu0
    %643 = vmatprep.subr.bf16.mxu0 0
    %644 = vmatpush1.bf16.msra.mxu0 %v474
    %645 = vmatprep.subr.bf16.mxu0 0
    %646 = vmatpush1.bf16.msra.mxu0 %v473
    %647 = vmatprep.subr.bf16.mxu0 0
    %648 = vmatpush1.bf16.msra.mxu0 %v472
    %649 = vmatprep.subr.bf16.mxu0 0
    %650 = vmatpush1.bf16.msra.mxu0 %v471
    %651 = vmatprep.subr.bf16.mxu0 0
    %652 = vmatpush1.bf16.msra.mxu0 %v470
    %653 = vmatprep.subr.bf16.mxu0 0
    %654 = vmatpush1.bf16.msra.mxu0 %v469
    %655 = vmatprep.subr.bf16.mxu0 0
    %656 = vmatpush1.bf16.msra.mxu0 %v468
    %657 = vmatprep.subr.bf16.mxu0 0
    %658 = vmatpush1.bf16.msra.mxu0 %v467
    %659 = vmatprep.subr.bf16.mxu0 0
    %660 = vmatpush2.bf16.msra.mxu0 %v482
    %661 = vmatprep.subr.bf16.mxu0 0
    %662 = vmatpush2.bf16.msra.mxu0 %v481
    %663 = vmatprep.subr.bf16.mxu0 0
    %664 = vmatpush2.bf16.msra.mxu0 %v480
    %665 = vmatprep.subr.bf16.mxu0 0
    %666 = vmatpush2.bf16.msra.mxu0 %v479
    %667 = vmatprep.subr.bf16.mxu0 0
    %668 = vmatpush2.bf16.msra.mxu0 %v478
    %669 = vmatprep.subr.bf16.mxu0 0
    %670 = vmatpush2.bf16.msra.mxu0 %v477
    %671 = vmatprep.subr.bf16.mxu0 0
    %672 = vmatpush2.bf16.msra.mxu0 %v476
    %673 = vmatprep.subr.bf16.mxu0 0
    %674 = vmatpush2.bf16.msra.mxu0 %v475
    %675 = vmatprep.mubr.bf16.mxu0 %v48
    %676 = vmatmul.mubr.bf16.gmra.mxu0 %v47
    %v677 = vpop.f32.mrf.mxu0
    %v678 = vadd.f32 %v638, %v677
    %v679 = vpop.f32.mrf.mxu0
    %v680 = vpop.f32.mrf.mxu0
    %v681 = vpop.f32.mrf.mxu0
    %682 = vdwg.mxu0
    %683 = vmatprep.subr.bf16.mxu0 0
    %684 = vmatpush1.bf16.msra.mxu0 %v490
    %685 = vmatprep.subr.bf16.mxu0 0
    %686 = vmatpush1.bf16.msra.mxu0 %v489
    %687 = vmatprep.subr.bf16.mxu0 0
    %688 = vmatpush1.bf16.msra.mxu0 %v488
    %689 = vmatprep.subr.bf16.mxu0 0
    %690 = vmatpush1.bf16.msra.mxu0 %v487
    %691 = vmatprep.subr.bf16.mxu0 0
    %692 = vmatpush1.bf16.msra.mxu0 %v486
    %693 = vmatprep.subr.bf16.mxu0 0
    %694 = vmatpush1.bf16.msra.mxu0 %v485
    %695 = vmatprep.subr.bf16.mxu0 0
    %696 = vmatpush1.bf16.msra.mxu0 %v484
    %697 = vmatprep.subr.bf16.mxu0 0
    %698 = vmatpush1.bf16.msra.mxu0 %v483
    %699 = vmatprep.subr.bf16.mxu0 0
    %700 = vmatpush2.bf16.msra.mxu0 %v498
    %701 = vmatprep.subr.bf16.mxu0 0
    %702 = vmatpush2.bf16.msra.mxu0 %v497
    %703 = vmatprep.subr.bf16.mxu0 0
    %704 = vmatpush2.bf16.msra.mxu0 %v496
    %705 = vmatprep.subr.bf16.mxu0 0
    %706 = vmatpush2.bf16.msra.mxu0 %v495
    %707 = vmatprep.subr.bf16.mxu0 0
    %708 = vmatpush2.bf16.msra.mxu0 %v494
    %709 = vmatprep.subr.bf16.mxu0 0
    %710 = vmatpush2.bf16.msra.mxu0 %v493
    %711 = vmatprep.subr.bf16.mxu0 0
    %712 = vmatpush2.bf16.msra.mxu0 %v492
    %713 = vmatprep.subr.bf16.mxu0 0
    %714 = vmatpush2.bf16.msra.mxu0 %v491
    %715 = vmatprep.mubr.bf16.mxu0 %v50
    %716 = vmatmul.mubr.bf16.gmra.mxu0 %v49
    %v717 = vpop.f32.mrf.mxu0
    %v718 = vadd.f32 %v678, %v717
    %v719 = vpop.f32.mrf.mxu0
    %v720 = vpop.f32.mrf.mxu0
    %v721 = vpop.f32.mrf.mxu0
    %722 = vdwg.mxu0
    %v723 = vadd.f32 %v34, %v718
    %vm724 = vcmask 523264
    %725 = vst.msk [vmem:[#allocation2] sm:$0xff] %vm724, %v723
    // Predicated region
    $region34: #{tpu_custom_call.1} parent=1 // pred_check
      %p726 = pneg %p28
    $region35: #{tpu_custom_call.1} parent=1 // pred_check_branch
      %728 = sbr.rel (%p726) target = $region37
    $region36: #{tpu_custom_call.1} parent=1 // pred_region
      %v729 = vld [vmem:[#allocation2] sm:$0xff]
      %v730 = vld [vmem:[%s2] sm:$0x1]
      %v732 = vlaneseq
      %v733 = vshrl.u32 %v732, 7
      %v734 = vsub.s32 0, %v733
      %v735 = vrot.slane %v730, %v734
      %v737 = vadd.f32 %v729, %v735
      %v738 = vmax.f32 %v737, 0.0
      %v739 = vpack.c.bf16 %v738, %v738
      %v740 = vld [vmem:[%s3] sm:$0xf]
      %v741 = vld [vmem:[%s3 + $0x4] sm:$0xf]
      %v742 = vld [vmem:[%s3 + $0x8] sm:$0xf]
      %v743 = vld [vmem:[%s3 + $0xc] sm:$0xf]
      %v744 = vld [vmem:[%s3 + $0x10] sm:$0xf]
      %v745 = vld [vmem:[%s3 + $0x14] sm:$0xf]
      %v746 = vld [vmem:[%s3 + $0x18] sm:$0xf]
      %v747 = vld [vmem:[%s3 + $0x1c] sm:$0xf]
      %v748 = vld [vmem:[%s4] sm:$0x1]
      %v750 = vlaneseq
      %v751 = vshrl.u32 %v750, 7
      %v752 = vsub.s32 0, %v751
      %v753 = vrot.slane %v748, %v752
      %v763 = vunpack.c.l.b16 %v740
      %v764 = vunpack.c.l.b16 %v741
      %v765 = vunpack.c.l.b16 %v742
      %v766 = vunpack.c.l.b16 %v743
      %v767 = vunpack.c.l.b16 %v744
      %v768 = vunpack.c.l.b16 %v745
      %v769 = vunpack.c.l.b16 %v746
      %v770 = vunpack.c.l.b16 %v747
      %v771 = vpack.c.b16 %v764, %v763
      %v772 = vpack.c.b16 %v766, %v765
      %v773 = vpack.c.b16 %v768, %v767
      %v774 = vpack.c.b16 %v770, %v769
      %v780 = vsel %vm724, %v739, 0
      %782 = vmatprep.subr.bf16.mxu0 0
      %783 = vmatpush1.bf16.msra.mxu0 0
      %784 = vmatprep.subr.bf16.mxu0 0
      %785 = vmatpush1.bf16.msra.mxu0 0
      %786 = vmatprep.subr.bf16.mxu0 0
      %787 = vmatpush1.bf16.msra.mxu0 0
      %788 = vmatprep.subr.bf16.mxu0 0
      %789 = vmatpush1.bf16.msra.mxu0 0
      %790 = vmatprep.subr.bf16.mxu0 0
      %791 = vmatpush1.bf16.msra.mxu0 %v774
      %792 = vmatprep.subr.bf16.mxu0 0
      %793 = vmatpush1.bf16.msra.mxu0 %v773
      %794 = vmatprep.subr.bf16.mxu0 0
      %795 = vmatpush1.bf16.msra.mxu0 %v772
      %796 = vmatprep.subr.bf16.mxu0 0
      %797 = vmatpush1.bf16.msra.mxu0 %v771
      %798 = vmatprep.subr.bf16.mxu0 0
      %799 = vmatpush2.bf16.msra.mxu0 0
      %800 = vmatprep.subr.bf16.mxu0 0
      %801 = vmatpush2.bf16.msra.mxu0 0
      %802 = vmatprep.subr.bf16.mxu0 0
      %803 = vmatpush2.bf16.msra.mxu0 0
      %804 = vmatprep.subr.bf16.mxu0 0
      %805 = vmatpush2.bf16.msra.mxu0 0
      %806 = vmatprep.subr.bf16.mxu0 0
      %807 = vmatpush2.bf16.msra.mxu0 0
      %808 = vmatprep.subr.bf16.mxu0 0
      %809 = vmatpush2.bf16.msra.mxu0 0
      %810 = vmatprep.subr.bf16.mxu0 0
      %811 = vmatpush2.bf16.msra.mxu0 0
      %812 = vmatprep.subr.bf16.mxu0 0
      %813 = vmatpush2.bf16.msra.mxu0 0
      %814 = vmatprep.mubr.bf16.mxu0 0
      %815 = vmatmul.mubr.bf16.gmra.mxu0 %v780
      %v816 = vpop.f32.mrf.mxu0
      %v817 = vadd.f32 %v753, %v816
      %v818 = vpop.f32.mrf.mxu0
      %v819 = vpop.f32.mrf.mxu0
      %v820 = vpop.f32.mrf.mxu0
      %821 = vdwg.mxu0
      %v822 = vmax.f32 %v817, 0.0
      %v823 = vpack.c.bf16 %v822, %v822
      %v824 = vld [vmem:[%s5] sm:$0xf]
      %v825 = vld [vmem:[%s5 + $0x4] sm:$0xf]
      %v826 = vld [vmem:[%s5 + $0x8] sm:$0xf]
      %v827 = vld [vmem:[%s5 + $0xc] sm:$0xf]
      %v828 = vld [vmem:[%s6] sm:$0x1]
      %v830 = vlaneseq
      %v831 = vshrl.u32 %v830, 7
      %v832 = vsub.s32 0, %v831
      %v833 = vrot.slane %v828, %v832
      %v839 = vunpack.c.l.b16 %v824
      %v840 = vunpack.c.l.b16 %v825
      %v841 = vunpack.c.l.b16 %v826
      %v842 = vunpack.c.l.b16 %v827
      %v843 = vpack.c.b16 %v840, %v839
      %v844 = vpack.c.b16 %v842, %v841
      %vm847 = vcmask 261120
      %v849 = vsel %vm847, %v823, 0
      %851 = vmatprep.subr.bf16.mxu0 0
      %852 = vmatpush1.bf16.msra.mxu0 0
      %853 = vmatprep.subr.bf16.mxu0 0
      %854 = vmatpush1.bf16.msra.mxu0 0
      %855 = vmatprep.subr.bf16.mxu0 0
      %856 = vmatpush1.bf16.msra.mxu0 0
      %857 = vmatprep.subr.bf16.mxu0 0
      %858 = vmatpush1.bf16.msra.mxu0 0
      %859 = vmatprep.subr.bf16.mxu0 0
      %860 = vmatpush1.bf16.msra.mxu0 0
      %861 = vmatprep.subr.bf16.mxu0 0
      %862 = vmatpush1.bf16.msra.mxu0 0
      %863 = vmatprep.subr.bf16.mxu0 0
      %864 = vmatpush1.bf16.msra.mxu0 %v844
      %865 = vmatprep.subr.bf16.mxu0 0
      %866 = vmatpush1.bf16.msra.mxu0 %v843
      %867 = vmatprep.subr.bf16.mxu0 0
      %868 = vmatpush2.bf16.msra.mxu0 0
      %869 = vmatprep.subr.bf16.mxu0 0
      %870 = vmatpush2.bf16.msra.mxu0 0
      %871 = vmatprep.subr.bf16.mxu0 0
      %872 = vmatpush2.bf16.msra.mxu0 0
      %873 = vmatprep.subr.bf16.mxu0 0
      %874 = vmatpush2.bf16.msra.mxu0 0
      %875 = vmatprep.subr.bf16.mxu0 0
      %876 = vmatpush2.bf16.msra.mxu0 0
      %877 = vmatprep.subr.bf16.mxu0 0
      %878 = vmatpush2.bf16.msra.mxu0 0
      %879 = vmatprep.subr.bf16.mxu0 0
      %880 = vmatpush2.bf16.msra.mxu0 0
      %881 = vmatprep.subr.bf16.mxu0 0
      %882 = vmatpush2.bf16.msra.mxu0 0
      %883 = vmatprep.mubr.bf16.mxu0 0
      %884 = vmatmul.mubr.bf16.gmra.mxu0 %v849
      %v885 = vpop.f32.mrf.mxu0
      %v886 = vadd.f32 %v833, %v885
      %v887 = vpop.f32.mrf.mxu0
      %v888 = vpop.f32.mrf.mxu0
      %v889 = vpop.f32.mrf.mxu0
      %890 = vdwg.mxu0
      %891 = vst [vmem:[#allocation3] sm:$0xff] %v886
    $region37: #{tpu_custom_call.1} parent=1 // pred_fallthru
      _
    // Predicated region
    $region38: #{tpu_custom_call.1} parent=1 // pred_check
      _
    $region39: #{tpu_custom_call.1} parent=1 // pred_check_branch
      %893 = sbr.rel (0) target = $region41
    $region40: #{tpu_custom_call.1} parent=1 // pred_region
      %s895 = ssub.s32 128, 128
      %896 = vsyncadd [#allocation4], %s895
      %s898 = sshll.u32 [#allocation3], 4
      %s899 = int_to_ptr.vmem [resolvable:$true] %s898
      %901 = dma.vmem_to_hbm [thread:$0]  %s899, 128, %s7, [#allocation4]
    $region41: #{tpu_custom_call.1} parent=1 // pred_fallthru
      _
    // Predicated region
    $region42: #{tpu_custom_call.1} parent=1 // pred_check
      _
    $region43: #{tpu_custom_call.1} parent=1 // pred_check_branch
      %903 = sbr.rel (0) target = $region45
    $region44: #{tpu_custom_call.1} parent=1 // pred_region
      %904 = dma.done [#allocation4], 128
    $region45: #{tpu_custom_call.1} parent=1 // pred_fallthru
      _
    %905 = vsyncpa [#allocation4], 1

</llo_original>
